<compile_context>
chip_gen: v7x
topology: tpu7x:2x2x1
jax: 0.10.0
libtpu: 0.0.40
codegen_flags: <defaults>
</compile_context>

<pallas_src>
import functools

import jax
import jax.numpy as jnp
from jax.experimental import pallas as pl
from jax.experimental.pallas import tpu as pltpu


# ----------------------------------------------------------------------------
# Streaming kernels.  Input block (TB, 2*W): row t = [input row 2t | row 2t+1].
# Output block (TB, Wo).  The bodies differ only in how the adjacent
# column-pair max is expressed (review: avoid VMEM-materializing relayouts).
# ----------------------------------------------------------------------------
def _pool_kernel_strided(x_ref, o_ref):
    """Four lane-strided taps straight off the ref (preferred: no relayout)."""
    two_w = x_ref.shape[1]
    w = two_w // 2
    wo = w // 2
    a = x_ref[:, pl.ds(0, wo, stride=2)]        # x[2i,   2j]
    b = x_ref[:, pl.ds(1, wo, stride=2)]        # x[2i,   2j+1]
    c = x_ref[:, pl.ds(w, wo, stride=2)]        # x[2i+1, 2j]
    d = x_ref[:, pl.ds(w + 1, wo, stride=2)]    # x[2i+1, 2j+1]
    o_ref[...] = jnp.maximum(jnp.maximum(a, b), jnp.maximum(c, d))


def _pool_kernel_valslice(x_ref, o_ref):
    """Row-pair max on aligned slices, then strided slices of the value."""
    two_w = x_ref.shape[1]
    w = two_w // 2
    r = jnp.maximum(x_ref[:, pl.ds(0, w)], x_ref[:, pl.ds(w, w)])
    o_ref[...] = jnp.maximum(r[:, 0::2], r[:, 1::2])


def _pool_kernel_reshape(x_ref, o_ref):
    """Row-pair max, then (TB, W)->(TB, Wo, 2) reshape + max.  Last-resort
    streaming form; may relayout through VMEM on some Mosaic builds."""
    tb, two_w = x_ref.shape
    w = two_w // 2
    wo = w // 2
    r = jnp.maximum(x_ref[:, pl.ds(0, w)], x_ref[:, pl.ds(w, w)])
    o_ref[...] = jnp.max(r.reshape(tb, wo, 2), axis=-1)


_STREAMING_KERNELS = (
    _pool_kernel_strided,
    _pool_kernel_valslice,
    _pool_kernel_reshape,
)


def _make_pool_call(kernel_body, rows, two_w, wo, block_rows, dtype):
    itemsize = jnp.dtype(dtype).itemsize
    cost = pl.CostEstimate(
        flops=3 * rows * wo,                       # three maxes per output
        transcendentals=0,
        bytes_accessed=rows * (two_w + wo) * itemsize,
    )
    return pl.pallas_call(
        kernel_body,
        out_shape=jax.ShapeDtypeStruct((rows, wo), dtype),
        grid_spec=pltpu.PrefetchScalarGridSpec(
            num_scalar_prefetch=0,
            grid=(pl.cdiv(rows, block_rows),),
            in_specs=[pl.BlockSpec((block_rows, two_w), lambda i: (i, 0))],
            out_specs=pl.BlockSpec((block_rows, wo), lambda i: (i, 0)),
        ),
        compiler_params=pltpu.CompilerParams(
            dimension_semantics=("parallel",),       # megacore-shardable grid
            vmem_limit_bytes=48 * 1024 * 1024,
        ),
        cost_estimate=cost,
    )


def _choose_block_rows(rows, two_w, dtype):
    itemsize = jnp.dtype(dtype).itemsize
    # Sub-32-bit dtypes pack along sublanes: keep the block row count a
    # multiple of the packed sublane tile (8 f32, 16 bf16, 32 int8/fp8).
    row_mult = max(8, 32 // max(itemsize, 1))
    if rows <= row_mult:
        return rows                                  # single full-extent block
    # ~8 MiB of input per grid step: the ~0.35us fixed per-step cost stays
    # small even at v7x HBM rates, and the double-buffered in+out footprint
    # (~20 MiB) fits the VMEM budget on v5e / v6e / v7x.
    target_bytes = 8 * 1024 * 1024
    row_bytes = two_w * itemsize
    target = (target_bytes // max(row_bytes, 1)) // row_mult * row_mult
    target = max(row_mult, target)
    # Keep at least 2 grid steps so both v7x TensorCores get work (no-op on
    # single-TensorCore v5e/v6e).
    half = (rows // 2) // row_mult * row_mult
    if half >= row_mult:
        target = min(target, half)
    target = min(target, rows)
    # Prefer a block size that divides `rows`: a ragged last block burns a
    # full step of DMA + overhead on mostly-masked work.  (Pallas masks the
    # writeback of a partial block correctly either way.)
    for cand in range(target, row_mult - 1, -row_mult):
        if rows % cand == 0:
            return cand
    return target


@functools.lru_cache(maxsize=None)
def _select_streaming_kernel(dtype_name, two_w):
    """Pick the first streaming formulation this Mosaic build both compiles
    and evaluates exactly, using a tiny (8, 2*W) canary.  Cached per
    (dtype, W); uses only concrete data, so it is safe under jax.jit.
    Returns None if no streaming form works (-> gather fallback)."""
    dtype = jnp.dtype(dtype_name)
    w = two_w // 2
    wo = w // 2
    rows = 8
    key = jax.random.PRNGKey(1234)
    if jnp.issubdtype(dtype, jnp.floating):
        x = jax.random.normal(key, (rows, two_w), dtype=jnp.float32).astype(dtype)
    else:
        x = jax.random.randint(key, (rows, two_w), 0, 97, dtype=jnp.int32).astype(dtype)
    r = jnp.maximum(x[:, :w], x[:, w:])
    expected = jnp.max(r.reshape(rows, wo, 2), axis=-1)
    for body in _STREAMING_KERNELS:
        try:
            got = _make_pool_call(body, rows, two_w, wo, rows, dtype)(x)
            if bool(jnp.array_equal(got, expected)):
                return body
        except Exception:
            continue        # formulation not supported by this toolchain
    return None


# ----------------------------------------------------------------------------
# Last-resort fallback: taps gathered by XLA (extra strided HBM pass).
# Only reached if no streaming formulation lowers on this toolchain.
# ----------------------------------------------------------------------------
def _pool_gather_kernel(x_ref, o_ref):
    # x_ref: (1, 2, 2, Ho, Wo); o_ref: (1, Ho, Wo)
    a = x_ref[0, 0, 0]
    b = x_ref[0, 0, 1]
    c = x_ref[0, 1, 0]
    d = x_ref[0, 1, 1]
    o_ref[0] = jnp.maximum(jnp.maximum(a, b), jnp.maximum(c, d))


def _downsample_fallback(x, ho, wo):
    # TODO(synk): if this path is ever hit in production, batch several images
    # per grid step and remove the pre-kernel transpose; treat hitting it at
    # all as a toolchain regression (it costs an extra HBM pass).
    n, c, _, _ = x.shape
    xg = x.reshape(n * c, ho, 2, wo, 2).transpose(0, 2, 4, 1, 3)
    out = pl.pallas_call(
        _pool_gather_kernel,
        out_shape=jax.ShapeDtypeStruct((n * c, ho, wo), x.dtype),
        grid_spec=pltpu.PrefetchScalarGridSpec(
            num_scalar_prefetch=0,
            grid=(n * c,),
            in_specs=[pl.BlockSpec((1, 2, 2, ho, wo),
                                   lambda i: (i, 0, 0, 0, 0))],
            out_specs=pl.BlockSpec((1, ho, wo), lambda i: (i, 0, 0)),
        ),
        compiler_params=pltpu.CompilerParams(
            dimension_semantics=("parallel",)),
    )(xg)
    return out.reshape(n, c, ho, wo)


# ----------------------------------------------------------------------------
# Public wrapper (== DownSample.forward)
# ----------------------------------------------------------------------------
def downsample(x):
    """MaxPool2d(kernel_size=2, stride=2) on an NCHW tensor."""
    n, c, h, w = x.shape
    ho, wo = h // 2, w // 2
    assert ho > 0 and wo > 0, "MaxPool2d(2) needs H >= 2 and W >= 2"
    if (h % 2) or (w % 2):
        # nn.MaxPool2d(2) floors odd spatial dims (drops last row/column).
        # TODO(synk): fold this crop into the index_map to avoid the extra XLA
        # copy the non-contiguous slice forces on the odd-shape path.
        x = x[:, :, : 2 * ho, : 2 * wo]
        h, w = 2 * ho, 2 * wo

    two_w = 2 * w
    rows = n * c * ho

    body = _select_streaming_kernel(jnp.dtype(x.dtype).name, two_w)
    if body is None:
        return _downsample_fallback(x, ho, wo)

    # Free contiguous reshape: one 2-D row per 2-row pooling group.
    x2d = x.reshape(rows, two_w)
    block_rows = _choose_block_rows(rows, two_w, x.dtype)
    out2d = _make_pool_call(body, rows, two_w, wo, block_rows, x.dtype)(x2d)
    return out2d.reshape(n, c, ho, wo)


if __name__ == "__main__":
    key = jax.random.PRNGKey(0)
    # Small NCHW input consistent with DownSample.forward.
    x = jax.random.normal(key, (2, 4, 16, 16), dtype=jnp.float32)

    y = jax.block_until_ready(downsample(x))

    # Pure-JAX reference max pool.
    n, c, h, w = x.shape
    ref = jnp.max(x.reshape(n, c, h // 2, 2, w // 2, 2), axis=(3, 5))
    assert y.shape == (2, 4, 8, 8), y.shape
    assert y.dtype == x.dtype, y.dtype
    assert jnp.array_equal(y, ref), "mismatch vs reference max pool"

    # Odd spatial dims exercise the floor/crop path (matches nn.MaxPool2d(2)).
    x2 = jax.random.normal(jax.random.PRNGKey(1), (1, 3, 9, 11), dtype=jnp.float32)
    y2 = jax.block_until_ready(downsample(x2))
    ref2 = jnp.max(x2[:, :, :8, :10].reshape(1, 3, 4, 2, 5, 2), axis=(3, 5))
    assert y2.shape == (1, 3, 4, 5), y2.shape
    assert jnp.array_equal(y2, ref2), "mismatch on odd-dim input"

    print("KERNEL_OK")
</pallas_src>

<mosaic_0001>
module attributes {stable_mosaic.version = 11 : i64} {
  func.func @_pool_kernel_strided(%arg0: i32, %arg1: memref<8x32xf32, #tpu.memory_space<vmem>>, %arg2: memref<8x8xf32, #tpu.memory_space<vmem>>) attributes {dimension_semantics = [#tpu.dimension_semantics<parallel>], iteration_bounds = array<i64: 1>, scalar_prefetch = 0 : i64, scratch_operands = 0 : i64, tpu.core_type = #tpu.core_type<tc>, window_params = [{transform_indices = @transform_0, window_bounds = array<i64: 8, 32>}, {transform_indices = @transform_1, window_bounds = array<i64: 8, 8>}]} {
    %c0 = arith.constant 0 : index
    %c0_0 = arith.constant 0 : index
    %0 = tpu.strided_load %arg1[%c0, %c0_0] {strides = array<i32: 1, 2>} : memref<8x32xf32, #tpu.memory_space<vmem>>, vector<8x8xf32>
    %c0_1 = arith.constant 0 : index
    %c1 = arith.constant 1 : index
    %1 = tpu.strided_load %arg1[%c0_1, %c1] {strides = array<i32: 1, 2>} : memref<8x32xf32, #tpu.memory_space<vmem>>, vector<8x8xf32>
    %c0_2 = arith.constant 0 : index
    %c16 = arith.constant 16 : index
    %2 = tpu.strided_load %arg1[%c0_2, %c16] {strides = array<i32: 1, 2>} : memref<8x32xf32, #tpu.memory_space<vmem>>, vector<8x8xf32>
    %c0_3 = arith.constant 0 : index
    %c17 = arith.constant 17 : index
    %3 = tpu.strided_load %arg1[%c0_3, %c17] {strides = array<i32: 1, 2>} : memref<8x32xf32, #tpu.memory_space<vmem>>, vector<8x8xf32>
    %4 = arith.maximumf %0, %1 : vector<8x8xf32>
    %5 = arith.maximumf %2, %3 : vector<8x8xf32>
    %6 = arith.maximumf %4, %5 : vector<8x8xf32>
    %c0_4 = arith.constant 0 : index
    %c0_5 = arith.constant 0 : index
    %7 = vector.load %arg2[%c0_4, %c0_5] : memref<8x8xf32, #tpu.memory_space<vmem>>, vector<8x8xf32>
    tpu.vector_store %arg2[%c0_4, %c0_5], %6 {strides = array<i32>} : memref<8x8xf32, #tpu.memory_space<vmem>>, vector<8x8xf32>,
    return
  }
  func.func @transform_0(%arg0: i32) -> (i32, i32) {
    %c0_i32 = arith.constant 0 : i32
    %c0_i32_0 = arith.constant 0 : i32
    return %arg0, %c0_i32 : i32, i32
  }
  func.func @transform_1(%arg0: i32) -> (i32, i32) {
    %c0_i32 = arith.constant 0 : i32
    %c0_i32_0 = arith.constant 0 : i32
    return %arg0, %c0_i32 : i32, i32
  }
}

module attributes {stable_mosaic.version = 11 : i64} {
  func.func @_pool_kernel_reshape(%arg0: i32, %arg1: memref<8x32xf32, #tpu.memory_space<vmem>>, %arg2: memref<8x8xf32, #tpu.memory_space<vmem>>) attributes {dimension_semantics = [#tpu.dimension_semantics<parallel>], iteration_bounds = array<i64: 1>, scalar_prefetch = 0 : i64, scratch_operands = 0 : i64, tpu.core_type = #tpu.core_type<tc>, window_params = [{transform_indices = @transform_0, window_bounds = array<i64: 8, 32>}, {transform_indices = @transform_1, window_bounds = array<i64: 8, 8>}]} {
    %c0 = arith.constant 0 : index
    %c0_0 = arith.constant 0 : index
    %0 = vector.load %arg1[%c0, %c0_0] : memref<8x32xf32, #tpu.memory_space<vmem>>, vector<8x16xf32>
    %c0_1 = arith.constant 0 : index
    %c16 = arith.constant 16 : index
    %1 = vector.load %arg1[%c0_1, %c16] : memref<8x32xf32, #tpu.memory_space<vmem>>, vector<8x16xf32>
    %2 = arith.maximumf %0, %1 : vector<8x16xf32>
    %3 = vector.shape_cast %2 : vector<8x16xf32> to vector<8x8x2xf32>
    %cst = arith.constant dense<0xFF800000> : vector<8x8xf32>
    %4 = vector.multi_reduction <maximumf>, %3, %cst [2] : vector<8x8x2xf32> to vector<8x8xf32>
    %c0_2 = arith.constant 0 : index
    %c0_3 = arith.constant 0 : index
    %5 = vector.load %arg2[%c0_2, %c0_3] : memref<8x8xf32, #tpu.memory_space<vmem>>, vector<8x8xf32>
    tpu.vector_store %arg2[%c0_2, %c0_3], %4 {strides = array<i32>} : memref<8x8xf32, #tpu.memory_space<vmem>>, vector<8x8xf32>,
    return
  }
  func.func @transform_0(%arg0: i32) -> (i32, i32) {
    %c0_i32 = arith.constant 0 : i32
    %c0_i32_0 = arith.constant 0 : i32
    return %arg0, %c0_i32 : i32, i32
  }
  func.func @transform_1(%arg0: i32) -> (i32, i32) {
    %c0_i32 = arith.constant 0 : i32
    %c0_i32_0 = arith.constant 0 : i32
    return %arg0, %c0_i32 : i32, i32
  }
}

module attributes {stable_mosaic.version = 11 : i64} {
  func.func @_pool_gather_kernel(%arg0: i32, %arg1: memref<1x2x2x8x8xf32, #tpu.memory_space<vmem>>, %arg2: memref<1x8x8xf32, #tpu.memory_space<vmem>>) attributes {dimension_semantics = [#tpu.dimension_semantics<parallel>], iteration_bounds = array<i64: 8>, scalar_prefetch = 0 : i64, scratch_operands = 0 : i64, tpu.core_type = #tpu.core_type<tc>, window_params = [{transform_indices = @transform_0, window_bounds = array<i64: 1, 2, 2, 8, 8>}, {transform_indices = @transform_1, window_bounds = array<i64: 1, 8, 8>}]} {
    %c0 = arith.constant 0 : index
    %c0_0 = arith.constant 0 : index
    %c0_1 = arith.constant 0 : index
    %c0_2 = arith.constant 0 : index
    %c0_3 = arith.constant 0 : index
    %0 = vector.load %arg1[%c0, %c0_0, %c0_1, %c0_2, %c0_3] : memref<1x2x2x8x8xf32, #tpu.memory_space<vmem>>, vector<1x1x1x8x8xf32>
    %1 = vector.shape_cast %0 : vector<1x1x1x8x8xf32> to vector<8x8xf32>
    %c0_4 = arith.constant 0 : index
    %c0_5 = arith.constant 0 : index
    %c1 = arith.constant 1 : index
    %c0_6 = arith.constant 0 : index
    %c0_7 = arith.constant 0 : index
    %2 = vector.load %arg1[%c0_4, %c0_5, %c1, %c0_6, %c0_7] : memref<1x2x2x8x8xf32, #tpu.memory_space<vmem>>, vector<1x1x1x8x8xf32>
    %3 = vector.shape_cast %2 : vector<1x1x1x8x8xf32> to vector<8x8xf32>
    %c0_8 = arith.constant 0 : index
    %c1_9 = arith.constant 1 : index
    %c0_10 = arith.constant 0 : index
    %c0_11 = arith.constant 0 : index
    %c0_12 = arith.constant 0 : index
    %4 = vector.load %arg1[%c0_8, %c1_9, %c0_10, %c0_11, %c0_12] : memref<1x2x2x8x8xf32, #tpu.memory_space<vmem>>, vector<1x1x1x8x8xf32>
    %5 = vector.shape_cast %4 : vector<1x1x1x8x8xf32> to vector<8x8xf32>
    %c0_13 = arith.constant 0 : index
    %c1_14 = arith.constant 1 : index
    %c1_15 = arith.constant 1 : index
    %c0_16 = arith.constant 0 : index
    %c0_17 = arith.constant 0 : index
    %6 = vector.load %arg1[%c0_13, %c1_14, %c1_15, %c0_16, %c0_17] : memref<1x2x2x8x8xf32, #tpu.memory_space<vmem>>, vector<1x1x1x8x8xf32>
    %7 = vector.shape_cast %6 : vector<1x1x1x8x8xf32> to vector<8x8xf32>
    %8 = arith.maximumf %1, %3 : vector<8x8xf32>
    %9 = arith.maximumf %5, %7 : vector<8x8xf32>
    %10 = arith.maximumf %8, %9 : vector<8x8xf32>
    %c0_18 = arith.constant 0 : index
    %c0_19 = arith.constant 0 : index
    %c0_20 = arith.constant 0 : index
    %11 = vector.load %arg2[%c0_18, %c0_19, %c0_20] : memref<1x8x8xf32, #tpu.memory_space<vmem>>, vector<1x8x8xf32>
    %12 = vector.shape_cast %11 : vector<1x8x8xf32> to vector<8x8xf32>
    %13 = vector.shape_cast %10 : vector<8x8xf32> to vector<1x8x8xf32>
    tpu.vector_store %arg2[%c0_18, %c0_19, %c0_20], %13 {strides = array<i32>} : memref<1x8x8xf32, #tpu.memory_space<vmem>>, vector<1x8x8xf32>,
    return
  }
  func.func @transform_0(%arg0: i32) -> (i32, i32, i32, i32, i32) {
    %c0_i32 = arith.constant 0 : i32
    %c0_i32_0 = arith.constant 0 : i32
    %c0_i32_1 = arith.constant 0 : i32
    %c0_i32_2 = arith.constant 0 : i32
    %c0_i32_3 = arith.constant 0 : i32
    return %arg0, %c0_i32, %c0_i32_0, %c0_i32_1, %c0_i32_2 : i32, i32, i32, i32, i32
  }
  func.func @transform_1(%arg0: i32) -> (i32, i32, i32) {
    %c0_i32 = arith.constant 0 : i32
    %c0_i32_0 = arith.constant 0 : i32
    %c0_i32_1 = arith.constant 0 : i32
    return %arg0, %c0_i32, %c0_i32_0 : i32, i32, i32
  }
}

</mosaic_0001>

<llo_original>
// kernel: tpu_custom_call.1
$region0: #{tpu_custom_call.1}
  #allocation0 [shape = 'u32[]', space=smem, size = 0x4, offset = 0x4, fixed_abs, tag = 'smem constant byte address 0x4 - core index']
  #allocation1 [shape = 'u32[144,128]{1,0:T(1,128)}', space=vmem, size = 0x12000, scoped, tag = 'internal scratch']
  %s0 = inlined_call_operand.hbm [shape: f32[8,32], index: 0, kind: input, shape index: {}]
  %s1 = inlined_call_operand.hbm [shape: f32[8,8], index: 1, kind: output, shape index: {}]
  %s2 = sld [smem:[#allocation0]]
  $region18: #{tpu_custom_call.1} parent=0
    _
  %s4 = ssub.s32 1, %s2
  %s5 = scalar_select 0, %s4, %s2
  $region1: #{tpu_custom_call.1} parent=0
    #allocation2 [shape = 'u8[4096]{0}', space=vmem, size = 0x1000, scoped, tag = 'input window, operand 0, single buffered']
    #allocation3 [shape = 's32[1]{0}', space=sflag, size = 0x4, scoped, tag = 'scoped memory for tpu_custom_call.1']
    #allocation4 [shape = 's32[1]{0}', space=sflag, size = 0x4, scoped, tag = 'scoped memory for tpu_custom_call.1']
    #allocation5 [shape = 'u8[4096]{0}', space=vmem, size = 0x1000, scoped, tag = 'output window, operand 0, single buffered']
    %6 = vsyncpa [#allocation3], 0
    %7 = vsyncpa [#allocation4], 0
    // Predicated region
    $region2: #{tpu_custom_call.1} parent=1 // pred_check
      _
    $region3: #{tpu_custom_call.1} parent=1 // pred_check_branch
      %9 = sbr.rel (0) target = $region5
    $region4: #{tpu_custom_call.1} parent=1 // pred_region
      %s11 = ssub.s32 128, 128
      %12 = vsyncadd [#allocation3], %s11
      %s14 = sshll.u32 [#allocation2], 4
      %s15 = int_to_ptr.vmem [resolvable:$true] %s14
      %17 = dma.hbm_to_vmem [thread:$0]  %s0, 128, %s15, [#allocation3]
    $region5: #{tpu_custom_call.1} parent=1 // pred_fallthru
      _
    // Predicated region
    $region6: #{tpu_custom_call.1} parent=1 // pred_check
      _
    $region7: #{tpu_custom_call.1} parent=1 // pred_check_branch
      %19 = sbr.rel (0) target = $region9
    $region8: #{tpu_custom_call.1} parent=1 // pred_region
      %20 = dma.done [#allocation3], 128
    $region9: #{tpu_custom_call.1} parent=1 // pred_fallthru
      _
    %v21 = vld [vmem:[#allocation2] sm:$0xff]
    %23 = vrot.lane.b32.xlu0 %v21, 112
    %v24 = vpop.permute.xlu0 %23
    %v26 = vmax.f32 %v21, %v24
    %28 = vrot.lane.b32.xlu0 %v26, 126
    %v29 = vpop.permute.xlu0 %28
    %31 = vrot.lane.b32.xlu0 %v26, 124
    %v32 = vpop.permute.xlu0 %31
    %34 = vrot.lane.b32.xlu0 %v26, 122
    %v35 = vpop.permute.xlu0 %34
    %37 = vrot.lane.b32.xlu0 %v26, 120
    %v38 = vpop.permute.xlu0 %37
    %40 = vrot.lane.b32.xlu0 %v26, 118
    %v41 = vpop.permute.xlu0 %40
    %43 = vrot.lane.b32.xlu0 %v26, 116
    %v44 = vpop.permute.xlu0 %43
    %46 = vrot.lane.b32.xlu0 %v26, 114
    %v47 = vpop.permute.xlu0 %46
    %v49 = vcombine.low %v26, %v32
    %v50 = vcombine.high %v26, %v32
    %v52 = vunpack.c.l.s4 1983009808
    %v53 = vunpack.c.0.s8 %v52
    %v54 = vlaneseq
    %v55 = vshrl.u32 %v54, 7
    %v56 = vsub.s32 %v53, %v55
    %v57 = vrot.slane %v49, %v56
    %v59 = vunpack.c.l.s4 1983009808
    %v60 = vunpack.c.0.s8 %v59
    %v61 = vlaneseq
    %v62 = vshrl.u32 %v61, 7
    %v63 = vsub.s32 %v60, %v62
    %v64 = vrot.slane %v50, %v63
    %v65 = vcombine.low %v29, %v35
    %v66 = vcombine.high %v29, %v35
    %v68 = vunpack.c.l.s4 1983009808
    %v69 = vunpack.c.0.s8 %v68
    %v70 = vlaneseq
    %v71 = vshrl.u32 %v70, 7
    %v72 = vsub.s32 %v69, %v71
    %v73 = vrot.slane %v65, %v72
    %v75 = vunpack.c.l.s4 1983009808
    %v76 = vunpack.c.0.s8 %v75
    %v77 = vlaneseq
    %v78 = vshrl.u32 %v77, 7
    %v79 = vsub.s32 %v76, %v78
    %v80 = vrot.slane %v66, %v79
    %v81 = vcombine.low %v38, %v44
    %v82 = vcombine.high %v38, %v44
    %v84 = vunpack.c.l.s4 1983009808
    %v85 = vunpack.c.0.s8 %v84
    %v86 = vlaneseq
    %v87 = vshrl.u32 %v86, 7
    %v88 = vsub.s32 %v85, %v87
    %v89 = vrot.slane %v81, %v88
    %v91 = vunpack.c.l.s4 1983009808
    %v92 = vunpack.c.0.s8 %v91
    %v93 = vlaneseq
    %v94 = vshrl.u32 %v93, 7
    %v95 = vsub.s32 %v92, %v94
    %v96 = vrot.slane %v82, %v95
    %v97 = vcombine.low %v41, %v47
    %v98 = vcombine.high %v41, %v47
    %v100 = vunpack.c.l.s4 1983009808
    %v101 = vunpack.c.0.s8 %v100
    %v102 = vlaneseq
    %v103 = vshrl.u32 %v102, 7
    %v104 = vsub.s32 %v101, %v103
    %v105 = vrot.slane %v97, %v104
    %v107 = vunpack.c.l.s4 1983009808
    %v108 = vunpack.c.0.s8 %v107
    %v109 = vlaneseq
    %v110 = vshrl.u32 %v109, 7
    %v111 = vsub.s32 %v108, %v110
    %v112 = vrot.slane %v98, %v111
    %v113 = vcombine.low %v57, %v73
    %v114 = vcombine.high %v57, %v73
    %v116 = vunpack.c.l.s4 1934713408
    %v117 = vunpack.c.0.s8 %v116
    %v118 = vlaneseq
    %v119 = vshrl.u32 %v118, 7
    %v120 = vsub.s32 %v117, %v119
    %v121 = vrot.slane %v113, %v120
    %v123 = vunpack.c.l.s4 1934713408
    %v124 = vunpack.c.0.s8 %v123
    %v125 = vlaneseq
    %v126 = vshrl.u32 %v125, 7
    %v127 = vsub.s32 %v124, %v126
    %v128 = vrot.slane %v114, %v127
    %v129 = vcombine.low %v64, %v80
    %v130 = vcombine.high %v64, %v80
    %v132 = vunpack.c.l.s4 1934713408
    %v133 = vunpack.c.0.s8 %v132
    %v134 = vlaneseq
    %v135 = vshrl.u32 %v134, 7
    %v136 = vsub.s32 %v133, %v135
    %v137 = vrot.slane %v129, %v136
    %v139 = vunpack.c.l.s4 1934713408
    %v140 = vunpack.c.0.s8 %v139
    %v141 = vlaneseq
    %v142 = vshrl.u32 %v141, 7
    %v143 = vsub.s32 %v140, %v142
    %v144 = vrot.slane %v130, %v143
    %v145 = vcombine.low %v89, %v105
    %v146 = vcombine.high %v89, %v105
    %v148 = vunpack.c.l.s4 1934713408
    %v149 = vunpack.c.0.s8 %v148
    %v150 = vlaneseq
    %v151 = vshrl.u32 %v150, 7
    %v152 = vsub.s32 %v149, %v151
    %v153 = vrot.slane %v145, %v152
    %v155 = vunpack.c.l.s4 1934713408
    %v156 = vunpack.c.0.s8 %v155
    %v157 = vlaneseq
    %v158 = vshrl.u32 %v157, 7
    %v159 = vsub.s32 %v156, %v158
    %v160 = vrot.slane %v146, %v159
    %v161 = vcombine.low %v96, %v112
    %v162 = vcombine.high %v96, %v112
    %v164 = vunpack.c.l.s4 1934713408
    %v165 = vunpack.c.0.s8 %v164
    %v166 = vlaneseq
    %v167 = vshrl.u32 %v166, 7
    %v168 = vsub.s32 %v165, %v167
    %v169 = vrot.slane %v161, %v168
    %v171 = vunpack.c.l.s4 1934713408
    %v172 = vunpack.c.0.s8 %v171
    %v173 = vlaneseq
    %v174 = vshrl.u32 %v173, 7
    %v175 = vsub.s32 %v172, %v174
    %v176 = vrot.slane %v162, %v175
    %v177 = vcombine.low %v121, %v153
    %v178 = vcombine.high %v121, %v153
    %v179 = vcombine.low %v128, %v160
    %v180 = vcombine.high %v128, %v160
    %v181 = vcombine.low %v137, %v169
    %v182 = vcombine.high %v137, %v169
    %v183 = vcombine.low %v144, %v176
    %v184 = vcombine.high %v144, %v176
    %vm185 = vcmask 15360
    %v186 = vsel %vm185, %v177, -inf
    %187 = vmax.xlane.f32.xlu0 %v186
    %v188 = vpop.xlane.xlu0 %187
    %v189 = vsel %vm185, %v178, -inf
    %190 = vmax.xlane.f32.xlu0 %v189
    %v191 = vpop.xlane.xlu0 %190
    %v192 = vsel %vm185, %v179, -inf
    %193 = vmax.xlane.f32.xlu0 %v192
    %v194 = vpop.xlane.xlu0 %193
    %v195 = vsel %vm185, %v180, -inf
    %196 = vmax.xlane.f32.xlu0 %v195
    %v197 = vpop.xlane.xlu0 %196
    %v198 = vsel %vm185, %v181, -inf
    %199 = vmax.xlane.f32.xlu0 %v198
    %v200 = vpop.xlane.xlu0 %199
    %v201 = vsel %vm185, %v182, -inf
    %202 = vmax.xlane.f32.xlu0 %v201
    %v203 = vpop.xlane.xlu0 %202
    %v204 = vsel %vm185, %v183, -inf
    %205 = vmax.xlane.f32.xlu0 %v204
    %v206 = vpop.xlane.xlu0 %205
    %v207 = vsel %vm185, %v184, -inf
    %208 = vmax.xlane.f32.xlu0 %v207
    %v209 = vpop.xlane.xlu0 %208
    %v218 = vlaneseq
    %v219 = vand.u32 %v218, 127
    %v220 = vlaneseq
    %v221 = vshrl.u32 %v220, 7
    %v222 = vsub.s32 %v219, %v221
    %v223 = vrot.slane %v188, %v222
    %v224 = vlaneseq
    %v225 = vshrl.u32 %v224, 7
    %v226 = vsub.s32 %v219, %v225
    %v227 = vrot.slane %v191, %v226
    %v228 = vlaneseq
    %v229 = vshrl.u32 %v228, 7
    %v230 = vsub.s32 %v219, %v229
    %v231 = vrot.slane %v194, %v230
    %v232 = vlaneseq
    %v233 = vshrl.u32 %v232, 7
    %v234 = vsub.s32 %v219, %v233
    %v235 = vrot.slane %v197, %v234
    %v236 = vlaneseq
    %v237 = vshrl.u32 %v236, 7
    %v238 = vsub.s32 %v219, %v237
    %v239 = vrot.slane %v200, %v238
    %v240 = vlaneseq
    %v241 = vshrl.u32 %v240, 7
    %v242 = vsub.s32 %v219, %v241
    %v243 = vrot.slane %v203, %v242
    %v244 = vlaneseq
    %v245 = vshrl.u32 %v244, 7
    %v246 = vsub.s32 %v219, %v245
    %v247 = vrot.slane %v206, %v246
    %v248 = vlaneseq
    %v249 = vshrl.u32 %v248, 7
    %v250 = vsub.s32 %v219, %v249
    %v251 = vrot.slane %v209, %v250
    %vm252 = vcmask 1041409
    %v253 = vsel %vm252, %v227, %v223
    %vm254 = vcmask 1042434
    %v255 = vsel %vm254, %v231, %v253
    %vm256 = vcmask 1043459
    %v257 = vsel %vm256, %v235, %v255
    %vm258 = vcmask 1044484
    %v259 = vsel %vm258, %v239, %v257
    %vm260 = vcmask 1045509
    %v261 = vsel %vm260, %v243, %v259
    %vm262 = vcmask 1046534
    %v263 = vsel %vm262, %v247, %v261
    %vm264 = vcmask 1047559
    %v265 = vsel %vm264, %v251, %v263
    %vm267 = vcmask 64512
    %268 = vst.msk [vmem:[#allocation5] sm:$0xff] %vm267, %v265
    // Predicated region
    $region10: #{tpu_custom_call.1} parent=1 // pred_check
      _
    $region11: #{tpu_custom_call.1} parent=1 // pred_check_branch
      %270 = sbr.rel (0) target = $region13
    $region12: #{tpu_custom_call.1} parent=1 // pred_region
      %s272 = ssub.s32 128, 128
      %273 = vsyncadd [#allocation4], %s272
      %s275 = sshll.u32 [#allocation5], 4
      %s276 = int_to_ptr.vmem [resolvable:$true] %s275
      %278 = dma.vmem_to_hbm [thread:$0]  %s276, 128, %s1, [#allocation4]
    $region13: #{tpu_custom_call.1} parent=1 // pred_fallthru
      _
    // Predicated region
    $region14: #{tpu_custom_call.1} parent=1 // pred_check
      _
    $region15: #{tpu_custom_call.1} parent=1 // pred_check_branch
      %280 = sbr.rel (0) target = $region17
    $region16: #{tpu_custom_call.1} parent=1 // pred_region
      %281 = dma.done [#allocation4], 128
    $region17: #{tpu_custom_call.1} parent=1 // pred_fallthru
      _
    %282 = vsyncpa [#allocation3], 1
    %283 = vsyncpa [#allocation4], 1

// kernel: tpu_custom_call.1
$region0: #{tpu_custom_call.1}
  #allocation0 [shape = 'u32[]', space=smem, size = 0x4, offset = 0x4, fixed_abs, tag = 'smem constant byte address 0x4 - core index']
  #allocation1 [shape = 'u32[144,128]{1,0:T(1,128)}', space=vmem, size = 0x12000, scoped, tag = 'internal scratch']
  %s0 = inlined_call_operand.hbm [shape: f32[8,2,2,8,8], index: 0, kind: input, shape index: {}]
  %s1 = inlined_call_operand.hbm [shape: f32[8,8,8], index: 1, kind: output, shape index: {}]
  %s2 = sld [smem:[#allocation0]]
  $region41: #{tpu_custom_call.1} parent=0
    _
  %s4 = ssub.s32 1, %s2
  %s5 = scalar_select 0, %s4, %s2
  $region1: #{tpu_custom_call.1} parent=0
    #allocation2 [shape = 'u8[32768]{0}', space=vmem, size = 0x8000, scoped, tag = 'input window, operand 0']
    #allocation3 [shape = 's32[2]{0}', space=sflag, size = 0x8, scoped, tag = 'scoped memory for tpu_custom_call.1']
    #allocation4 [shape = 's32[2]{0}', space=sflag, size = 0x8, scoped, tag = 'scoped memory for tpu_custom_call.1']
    #allocation5 [shape = 'u8[8192]{0}', space=vmem, size = 0x2000, scoped, tag = 'output window, operand 0']
    %6 = vsyncpa [#allocation3], 0
    %s7 = scalar_lea.sflag [#allocation3], 1
    %8 = vsyncpa %s7, 0
    %9 = vsyncpa [#allocation4], 0
    %s10 = scalar_lea.sflag [#allocation4], 1
    %11 = vsyncpa %s10, 0
    loop: start=0, step=1, limit=10
    $region2: #{tpu_custom_call.1} parent=1 // loop_pre_header
      _
    $region3: #{tpu_custom_call.1} parent=1 // loop_header
      %s13 = sphi 0, %s17
      %p14 = scmp.ge.s32.totalorder %s13, 10
      %s23 = sphi 0, %s25
      %s26 = sphi 0, %s23
      %s27 = sphi 0, %s26
      %s43 = sphi 0, %s27
      %s49 = sphi 0, %s51
      %s52 = sphi 0, %s49
      %s53 = sphi 0, %s52
      %s69 = sphi 0, %s53
    $region4: #{tpu_custom_call.1} parent=1 // loop_header_branch
      %16 = sbr.rel (%p14) target = $region8
    $region5: #{tpu_custom_call.1} parent=1 // loop_body
      %s18 = ssub.s32 %s13, 1
      %s19 = ssub.s32 %s13, 2
      %s20 = sadd.s32 %s13, 1
      %s21 = ssub.s32 %s13, %s20
      %p22 = scmp.eq.s32.totalorder %s21, 0
      %s24 = sadd.s32 %s23, 1
      %s25 = scalar_select %p22, %s23, %s24
      %p28 = pneg %p22
      %p29 = scmp.eq.s32.totalorder %s13, 7
      %p30 = por %p28, %p29
      %p31 = scmp.ne.s32.totalorder %s23, %s26
      %p32 = scmp.eq.s32.totalorder %s13, 0
      %p33 = por %p31, %p32
      %p34 = scmp.ne.s32.totalorder %s23, %s26
      %p35 = scmp.eq.s32.totalorder %s18, 7
      %p36 = por %p34, %p35
      %p37 = scmp.ne.s32.totalorder %s26, %s27
      %p38 = scmp.eq.s32.totalorder %s18, 0
      %p39 = por %p37, %p38
      %p40 = scmp.ne.s32.totalorder %s26, %s27
      %p41 = scmp.eq.s32.totalorder %s19, 7
      %p42 = por %p40, %p41
      %p44 = scmp.ne.s32.totalorder %s27, %s43
      %p45 = scmp.eq.s32.totalorder %s19, 0
      %p46 = por %p44, %p45
      %s47 = ssub.s32 %s13, %s20
      %p48 = scmp.eq.s32.totalorder %s47, 0
      %s50 = sadd.s32 %s49, 1
      %s51 = scalar_select %p48, %s49, %s50
      %p54 = pneg %p48
      %p55 = scmp.eq.s32.totalorder %s13, 7
      %p56 = por %p54, %p55
      %p57 = scmp.ne.s32.totalorder %s49, %s52
      %p58 = scmp.eq.s32.totalorder %s13, 0
      %p59 = por %p57, %p58
      %p60 = scmp.ne.s32.totalorder %s49, %s52
      %p61 = scmp.eq.s32.totalorder %s18, 7
      %p62 = por %p60, %p61
      %p63 = scmp.ne.s32.totalorder %s52, %s53
      %p64 = scmp.eq.s32.totalorder %s18, 0
      %p65 = por %p63, %p64
      %p66 = scmp.ne.s32.totalorder %s52, %s53
      %p67 = scmp.eq.s32.totalorder %s19, 7
      %p68 = por %p66, %p67
      %p70 = scmp.ne.s32.totalorder %s53, %s69
      %p71 = scmp.eq.s32.totalorder %s19, 0
      %p72 = por %p70, %p71
      %p73 = scmp.le.s32.totalorder 1, %s13
      %p74 = scmp.lt.s32.totalorder %s13, 9
      %p75 = pnand %p73, %p74
      %p76 = pneg %p75
      // Predicated region
      $region9: #{tpu_custom_call.1} parent=5 // pred_check
        _
      $region10: #{tpu_custom_call.1} parent=5 // pred_check_branch
        %78 = sbr.rel (%p75) target = $region12
      $region11: #{tpu_custom_call.1} parent=5 // pred_region
        %s79 = ssub.s32 %s13, 1
      $region12: #{tpu_custom_call.1} parent=5 // pred_fallthru
        _
      %p80 = scmp.lt.s32.totalorder %s13, 8
      // Predicated region
      $region13: #{tpu_custom_call.1} parent=5 // pred_check
        %p81 = pneg %p80
      $region14: #{tpu_custom_call.1} parent=5 // pred_check_branch
        %83 = sbr.rel (%p81) target = $region16
      $region15: #{tpu_custom_call.1} parent=5 // pred_region
        // Predicated region
        $region17: #{tpu_custom_call.1} parent=15 // pred_check
          %p84 = pneg %p33
        $region18: #{tpu_custom_call.1} parent=15 // pred_check_branch
          %86 = sbr.rel (%p84) target = $region20
        $region19: #{tpu_custom_call.1} parent=15 // pred_region
          %s87 = sand.u32 %s23, 1
          %s88 = scalar_lea.sflag [#allocation3], %s87
          %s89 = sand.u32 %s23, 1
          %s90 = smul.addr %s89, 32
          %s91 = scalar_lea.vmem [#allocation2], %s90
          %s93 = ssub.s32 512, 512
          %94 = vsyncadd %s88, %s93
          %s95 = smul.addr %s13, 4
          %s96 = smul.addr %s95, 128
          %s97 = scalar_lea.hbm %s0, %s96
          %s98 = sshll.u32 %s91, 4
          %s99 = int_to_ptr.vmem [resolvable:$true] %s98
          %104 = dma.hbm_to_vmem [thread:$0]  %s97, 512, %s99, %s88, 128, 128, 8
        $region20: #{tpu_custom_call.1} parent=15 // pred_fallthru
          _
      $region16: #{tpu_custom_call.1} parent=5 // pred_fallthru
        _
      %p105 = scmp.le.s32.totalorder 1, %s13
      %p106 = scmp.lt.s32.totalorder %s13, 9
      %p107 = pnand %p105, %p106
      %p108 = pneg %p107
      // Predicated region
      $region21: #{tpu_custom_call.1} parent=5 // pred_check
        _
      $region22: #{tpu_custom_call.1} parent=5 // pred_check_branch
        %110 = sbr.rel (%p107) target = $region24
      $region23: #{tpu_custom_call.1} parent=5 // pred_region
        %s111 = ssub.s32 %s13, 1
        %s112 = sand.u32 %s26, 1
        %s113 = scalar_lea.sflag [#allocation3], %s112
        %s114 = sand.u32 %s26, 1
        %s115 = smul.addr %s114, 32
        %s116 = scalar_lea.vmem [#allocation2], %s115
        // Predicated region
        $region25: #{tpu_custom_call.1} parent=23 // pred_check
          %p117 = pneg %p39
        $region26: #{tpu_custom_call.1} parent=23 // pred_check_branch
          %119 = sbr.rel (%p117) target = $region28
        $region27: #{tpu_custom_call.1} parent=23 // pred_region
          %120 = dma.done %s113, 512
        $region28: #{tpu_custom_call.1} parent=23 // pred_fallthru
          _
        %s121 = sand.u32 %s26, 1
        %s122 = scalar_lea.sflag [#allocation3], %s121
        %s123 = sand.u32 %s26, 1
        %s124 = smul.addr %s123, 32
        %s125 = scalar_lea.vmem [#allocation2], %s124
        %p126 = pneg %p39
        %p127 = pneg %p36
        %p128 = pneg %p65
        %p129 = pneg %p62
        %s130 = sand.u32 %s52, 1
        %s131 = scalar_lea.sflag [#allocation4], %s130
        %s132 = sand.u32 %s52, 1
        %s133 = smul.addr %s132, 8
        %s134 = scalar_lea.vmem [#allocation5], %s133
        %v135 = vld [vmem:[%s116] sm:$0xff]
        %s136 = scalar_lea.vmem %s116, 8 [#allocation2]
        %v137 = vld [vmem:[%s136] sm:$0xff]
        %s138 = scalar_lea.vmem %s116, 16 [#allocation2]
        %v139 = vld [vmem:[%s138] sm:$0xff]
        %s140 = scalar_lea.vmem %s116, 24 [#allocation2]
        %v141 = vld [vmem:[%s140] sm:$0xff]
        %v142 = vmax.f32 %v135, %v137
        %v143 = vmax.f32 %v139, %v141
        %v144 = vmax.f32 %v142, %v143
        %vm145 = vcmask 64512
        %146 = vst.msk [vmem:[%s134] sm:$0xff] %vm145, %v144
        %s147 = sand.u32 %s52, 1
        %s148 = scalar_lea.sflag [#allocation4], %s147
        %s149 = sand.u32 %s52, 1
        %s150 = smul.addr %s149, 8
        %s151 = scalar_lea.vmem [#allocation5], %s150
        // Predicated region
        $region29: #{tpu_custom_call.1} parent=23 // pred_check
          %p152 = pneg %p62
        $region30: #{tpu_custom_call.1} parent=23 // pred_check_branch
          %154 = sbr.rel (%p152) target = $region32
        $region31: #{tpu_custom_call.1} parent=23 // pred_region
          %s156 = ssub.s32 128, 128
          %157 = vsyncadd %s148, %s156
          %s158 = smul.addr %s18, 128
          %s159 = scalar_lea.hbm %s1, %s158
          %s161 = sshll.u32 %s151, 4
          %s162 = int_to_ptr.vmem [resolvable:$true] %s161
          %164 = dma.vmem_to_hbm [thread:$0]  %s162, 128, %s159, %s148
        $region32: #{tpu_custom_call.1} parent=23 // pred_fallthru
          _
      $region24: #{tpu_custom_call.1} parent=5 // pred_fallthru
        _
      %p165 = scmp.le.s32.totalorder 2, %s13
      // Predicated region
      $region33: #{tpu_custom_call.1} parent=5 // pred_check
        %p166 = pneg %p165
      $region34: #{tpu_custom_call.1} parent=5 // pred_check_branch
        %168 = sbr.rel (%p166) target = $region36
      $region35: #{tpu_custom_call.1} parent=5 // pred_region
        %s169 = ssub.s32 %s13, 2
        // Predicated region
        $region37: #{tpu_custom_call.1} parent=35 // pred_check
          %p170 = pneg %p68
        $region38: #{tpu_custom_call.1} parent=35 // pred_check_branch
          %172 = sbr.rel (%p170) target = $region40
        $region39: #{tpu_custom_call.1} parent=35 // pred_region
          %s173 = sand.u32 %s53, 1
          %s174 = scalar_lea.sflag [#allocation4], %s173
          %s175 = sand.u32 %s53, 1
          %s176 = smul.addr %s175, 8
          %s177 = scalar_lea.vmem [#allocation5], %s176
          %178 = dma.done %s174, 128
        $region40: #{tpu_custom_call.1} parent=35 // pred_fallthru
          _
      $region36: #{tpu_custom_call.1} parent=5 // pred_fallthru
        _
    $region6: #{tpu_custom_call.1} parent=1 // loop_footer
      %s17 = sadd.s32 1, %s13
    $region7: #{tpu_custom_call.1} parent=1 // loop_footer_branch
      %12 = sbr.rel target = $region3
    $region8: #{tpu_custom_call.1} parent=1 // loop_exit
      _
    %179 = vsyncpa [#allocation3], 1
    %s180 = scalar_lea.sflag [#allocation3], 1
    %181 = vsyncpa %s180, 1
    %182 = vsyncpa [#allocation4], 1
    %s183 = scalar_lea.sflag [#allocation4], 1
    %184 = vsyncpa %s183, 1

</llo_original>
